<compile_context>
chip_gen: v7x
topology: tpu7x:2x2x1
jax: 0.10.0
libtpu: 0.0.40
codegen_flags: <defaults>
</compile_context>

<pallas_src>
import jax
import jax.numpy as jnp
from jax.experimental import pallas as pl
from jax.experimental.pallas import tpu as pltpu


def _transition_kernel(x_ref, scale2_ref, bias2_ref, w_ref, o_ref):
    """One (image n, row-tile t) block.

    x_ref:      (1, TILE_H, W/2, 2*C_in)  lanes = [even-col C_in | odd-col C_in]
    scale2_ref: (1, 1, 2*C_in)            folded BN scale, duplicated (eval mode)
    bias2_ref:  (1, 1, 2*C_in)            folded BN bias, duplicated
    w_ref:      (C_in, C_out)             1x1 conv weight * 0.25 (matmul dtype)
    o_ref:      (1, (TILE_H//2)*(W//2), C_out)
    """
    c_in = w_ref.shape[0]

    # Folded BatchNorm (eval) + ReLU on the VPU in f32 (v5e has no bf16 VPU),
    # done directly on the packed 2*C_in lane dim (lane-dense, no pre-slice).
    x = x_ref[0].astype(jnp.float32)                         # (TILE_H, Wh, 2*C_in)
    y = jnp.maximum(x * scale2_ref[...] + bias2_ref[...], 0.0)

    # Column-pair sum of the 2x2 pool: add the two lane halves.
    y = y[:, :, :c_in] + y[:, :, c_in:]                      # (TILE_H, Wh, C_in)

    # Row-pair sum: split the leading dim only (pure index arithmetic).
    tile_h, wh, _ = y.shape
    y = y.reshape(tile_h // 2, 2, wh, c_in)
    pooled = y[:, 0] + y[:, 1]                               # (TILE_H//2, Wh, C_in)
    # (the 1/4 pool factor is folded into w_ref in the wrapper)

    # 1x1 conv == channel matmul on the pooled activations (MXU, bf16 in, f32 acc).
    lhs = pooled.reshape((tile_h // 2) * wh, c_in).astype(w_ref.dtype)
    out = jnp.dot(lhs, w_ref[...], preferred_element_type=jnp.float32)
    o_ref[0] = out.astype(o_ref.dtype)


def _pick_tile_h(H, W, max_rows=2048):
    """Pick an even divisor of H so that the flattened block has ~512-2048 rows
    and the output block's sublane dim stays a multiple of 8."""
    wh = W // 2
    if H * W <= max_rows:
        return H
    best = None
    for t in range(2, H + 1, 2):
        if H % t or t * W > max_rows:
            continue
        if ((t // 2) * wh) % 8 != 0:
            continue
        best = t
    return best if best is not None else H


def transition_layer(x_nchw, gamma, beta, running_mean, running_var, conv_w,
                     eps=1e-5, tile_h=None, matmul_dtype=jnp.bfloat16):
    N, C_in, H, W = x_nchw.shape
    C_out = conv_w.shape[0]
    assert H % 2 == 0 and W % 2 == 0, "AvgPool2d(2,2) path assumes even H, W"
    Hh, Wh = H // 2, W // 2

    if tile_h is None:
        tile_h = _pick_tile_h(H, W)
    assert H % tile_h == 0 and tile_h % 2 == 0, tile_h
    assert tile_h == H or ((tile_h // 2) * Wh) % 8 == 0, \
        "output block sublane dim must be a multiple of 8 (or cover the full image)"
    n_tiles = H // tile_h

    # Fold eval-mode BN into per-channel scale / bias (plain-JAX glue), then
    # duplicate along the lane dim to match the (even|odd)-packed input block.
    inv_std = 1.0 / jnp.sqrt(running_var.astype(jnp.float32) + eps)
    scale = gamma.astype(jnp.float32) * inv_std
    bias = beta.astype(jnp.float32) - running_mean.astype(jnp.float32) * scale
    scale2 = jnp.concatenate([scale, scale]).reshape(1, 1, 2 * C_in)
    bias2 = jnp.concatenate([bias, bias]).reshape(1, 1, 2 * C_in)

    # NCHW -> (N, H, W/2, 2*C_in): channels-last with the column parity folded
    # into the lane dim (a pure reshape after the layout transpose).  The HBM
    # dtype is kept as given (pass bf16 to halve the memory-bound HBM traffic).
    x = jnp.transpose(x_nchw, (0, 2, 3, 1)).reshape(N, H, Wh, 2 * C_in)
    # 1x1 conv weight (C_out, C_in, 1, 1) -> (C_in, C_out), with the 1/4 pool
    # factor folded in (exact in bf16: power of two scale).
    w = (conv_w.reshape(C_out, C_in).T * 0.25).astype(matmul_dtype)
    out_dtype = x_nchw.dtype

    # VMEM budget: double-buffered blocks + f32 intermediates, capped v7x-safe.
    blk_in = tile_h * W * C_in * x.dtype.itemsize
    blk_out = (tile_h // 2) * Wh * C_out * jnp.dtype(out_dtype).itemsize
    blk_w = C_in * C_out * jnp.dtype(matmul_dtype).itemsize
    vmem_need = 2 * (blk_in + blk_out + blk_w) + 3 * tile_h * Wh * C_in * 4 + (2 << 20)
    vmem_limit = int(min(max(vmem_need, 32 << 20), 64 << 20))

    out_flat = pl.pallas_call(
        _transition_kernel,
        out_shape=jax.ShapeDtypeStruct((N, Hh * Wh, C_out), out_dtype),
        grid_spec=pltpu.PrefetchScalarGridSpec(
            num_scalar_prefetch=0,
            grid=(N, n_tiles),
            in_specs=[
                pl.BlockSpec((1, tile_h, Wh, 2 * C_in), lambda n, t: (n, t, 0, 0)),
                pl.BlockSpec((1, 1, 2 * C_in), lambda n, t: (0, 0, 0)),
                pl.BlockSpec((1, 1, 2 * C_in), lambda n, t: (0, 0, 0)),
                pl.BlockSpec((C_in, C_out), lambda n, t: (0, 0)),
            ],
            out_specs=pl.BlockSpec(
                (1, (tile_h // 2) * Wh, C_out), lambda n, t: (n, t, 0)),
        ),
        compiler_params=pltpu.CompilerParams(
            dimension_semantics=("parallel", "parallel"),
            vmem_limit_bytes=vmem_limit,
        ),
    )(x, scale2, bias2, w)

    # (N, Hh*Wh, C_out) -> NCHW
    return out_flat.reshape(N, Hh, Wh, C_out).transpose(0, 3, 1, 2)


def _reference(x, gamma, beta, mean, var, conv_w, eps=1e-5):
    """Pure-JAX (f32) reference matching PyTorch eval-mode forward."""
    xn = (x - mean[None, :, None, None]) / jnp.sqrt(var[None, :, None, None] + eps)
    xn = xn * gamma[None, :, None, None] + beta[None, :, None, None]
    xn = jnp.maximum(xn, 0.0)
    w2d = conv_w.reshape(conv_w.shape[0], conv_w.shape[1])
    z = jnp.einsum("nchw,oc->nohw", xn, w2d)
    N, C, H, W = z.shape
    return z.reshape(N, C, H // 2, 2, W // 2, 2).mean(axis=(3, 5))


if __name__ == "__main__":
    key = jax.random.PRNGKey(0)
    kx, kg, kb, km, kv, kw = jax.random.split(key, 6)

    N, C_in, H, W = 2, 8, 16, 16
    C_out = 4  # num_output_features

    x = jax.random.normal(kx, (N, C_in, H, W), dtype=jnp.float32)
    gamma = jax.random.uniform(kg, (C_in,), minval=0.5, maxval=1.5, dtype=jnp.float32)
    beta = 0.1 * jax.random.normal(kb, (C_in,), dtype=jnp.float32)
    running_mean = 0.1 * jax.random.normal(km, (C_in,), dtype=jnp.float32)
    running_var = jax.random.uniform(kv, (C_in,), minval=0.5, maxval=1.5, dtype=jnp.float32)
    conv_w = 0.1 * jax.random.normal(kw, (C_out, C_in, 1, 1), dtype=jnp.float32)

    ref = _reference(x, gamma, beta, running_mean, running_var, conv_w)

    # Default (auto-picked) spatial tile.
    out = jax.block_until_ready(
        transition_layer(x, gamma, beta, running_mean, running_var, conv_w))
    assert out.shape == (N, C_out, H // 2, W // 2), out.shape
    # bf16 matmul inputs with f32 accumulation -> loosened tolerance vs f32 ref.
    assert jnp.allclose(out, ref, atol=2e-2, rtol=2e-2), \
        float(jnp.max(jnp.abs(out - ref)))

    # Explicit multi-tile spatial grid (exercises the tiled pipeline path).
    out_tiled = jax.block_until_ready(
        transition_layer(x, gamma, beta, running_mean, running_var, conv_w, tile_h=4))
    assert jnp.allclose(out_tiled, ref, atol=2e-2, rtol=2e-2), \
        float(jnp.max(jnp.abs(out_tiled - ref)))
    assert jnp.allclose(out, out_tiled, atol=1e-5, rtol=1e-5)

    print("KERNEL_OK")
</pallas_src>

<mosaic_0001>
module attributes {stable_mosaic.version = 11 : i64} {
  func.func @_transition_kernel(%arg0: i32, %arg1: i32, %arg2: memref<1x16x8x16xf32, #tpu.memory_space<vmem>>, %arg3: memref<1x1x16xf32, #tpu.memory_space<vmem>>, %arg4: memref<1x1x16xf32, #tpu.memory_space<vmem>>, %arg5: memref<8x4xbf16, #tpu.memory_space<vmem>>, %arg6: memref<1x64x4xf32, #tpu.memory_space<vmem>>) attributes {dimension_semantics = [#tpu.dimension_semantics<parallel>, #tpu.dimension_semantics<parallel>], iteration_bounds = array<i64: 2, 1>, scalar_prefetch = 0 : i64, scratch_operands = 0 : i64, tpu.core_type = #tpu.core_type<tc>, window_params = [{transform_indices = @transform_0, window_bounds = array<i64: 1, 16, 8, 16>}, {pipeline_mode = #tpu.pipeline_mode<synchronous>, transform_indices = @transform_1, window_bounds = array<i64: 1, 1, 16>}, {pipeline_mode = #tpu.pipeline_mode<synchronous>, transform_indices = @transform_2, window_bounds = array<i64: 1, 1, 16>}, {pipeline_mode = #tpu.pipeline_mode<synchronous>, transform_indices = @transform_3, window_bounds = array<i64: 8, 4>}, {transform_indices = @transform_4, window_bounds = array<i64: 1, 64, 4>}]} {
    %c0 = arith.constant 0 : index
    %c0_0 = arith.constant 0 : index
    %c0_1 = arith.constant 0 : index
    %c0_2 = arith.constant 0 : index
    %0 = vector.load %arg2[%c0, %c0_0, %c0_1, %c0_2] : memref<1x16x8x16xf32, #tpu.memory_space<vmem>>, vector<1x16x8x16xf32>
    %1 = vector.shape_cast %0 : vector<1x16x8x16xf32> to vector<16x8x16xf32>
    %c0_3 = arith.constant 0 : index
    %c0_4 = arith.constant 0 : index
    %c0_5 = arith.constant 0 : index
    %2 = vector.load %arg3[%c0_3, %c0_4, %c0_5] : memref<1x1x16xf32, #tpu.memory_space<vmem>>, vector<1x1x16xf32>
    %3 = vector.broadcast %2 : vector<1x1x16xf32> to vector<16x8x16xf32>
    %4 = arith.mulf %1, %3 : vector<16x8x16xf32>
    %c0_6 = arith.constant 0 : index
    %c0_7 = arith.constant 0 : index
    %c0_8 = arith.constant 0 : index
    %5 = vector.load %arg4[%c0_6, %c0_7, %c0_8] : memref<1x1x16xf32, #tpu.memory_space<vmem>>, vector<1x1x16xf32>
    %6 = vector.broadcast %5 : vector<1x1x16xf32> to vector<16x8x16xf32>
    %7 = arith.addf %4, %6 : vector<16x8x16xf32>
    %cst = arith.constant 0.000000e+00 : f32
    %8 = vector.broadcast %cst : f32 to vector<16x8x16xf32>
    %9 = arith.maximumf %7, %8 : vector<16x8x16xf32>
    %10 = vector.extract_strided_slice %9 {offsets = [0, 0, 0], sizes = [16, 8, 8], strides = [1, 1, 1]} : vector<16x8x16xf32> to vector<16x8x8xf32>
    %11 = vector.extract_strided_slice %9 {offsets = [0, 0, 8], sizes = [16, 8, 8], strides = [1, 1, 1]} : vector<16x8x16xf32> to vector<16x8x8xf32>
    %12 = arith.addf %10, %11 : vector<16x8x8xf32>
    %13 = vector.shape_cast %12 : vector<16x8x8xf32> to vector<8x2x8x8xf32>
    %14 = vector.extract_strided_slice %13 {offsets = [0, 0, 0, 0], sizes = [8, 1, 8, 8], strides = [1, 1, 1, 1]} : vector<8x2x8x8xf32> to vector<8x1x8x8xf32>
    %15 = vector.shape_cast %14 : vector<8x1x8x8xf32> to vector<8x8x8xf32>
    %16 = vector.extract_strided_slice %13 {offsets = [0, 1, 0, 0], sizes = [8, 1, 8, 8], strides = [1, 1, 1, 1]} : vector<8x2x8x8xf32> to vector<8x1x8x8xf32>
    %17 = vector.shape_cast %16 : vector<8x1x8x8xf32> to vector<8x8x8xf32>
    %18 = arith.addf %15, %17 : vector<8x8x8xf32>
    %19 = vector.shape_cast %18 : vector<8x8x8xf32> to vector<64x8xf32>
    %20 = arith.truncf %19 : vector<64x8xf32> to vector<64x8xbf16>
    %c0_9 = arith.constant 0 : index
    %c0_10 = arith.constant 0 : index
    %21 = vector.load %arg5[%c0_9, %c0_10] : memref<8x4xbf16, #tpu.memory_space<vmem>>, vector<8x4xbf16>
    %cst_11 = arith.constant dense<0.000000e+00> : vector<64x4xf32>
    %22 = tpu.matmul %20, %21, %cst_11 {dimension_numbers = #tpu.dot_dimension_numbers<[1], [0], [0], [1], [0, 0, 1, 1], [], []>} : vector<64x8xbf16>, vector<8x4xbf16>, vector<64x4xf32> -> vector<64x4xf32>
    %c0_12 = arith.constant 0 : index
    %c0_13 = arith.constant 0 : index
    %c0_14 = arith.constant 0 : index
    %23 = vector.load %arg6[%c0_12, %c0_13, %c0_14] : memref<1x64x4xf32, #tpu.memory_space<vmem>>, vector<1x64x4xf32>
    %24 = vector.shape_cast %23 : vector<1x64x4xf32> to vector<64x4xf32>
    %25 = vector.shape_cast %22 : vector<64x4xf32> to vector<1x64x4xf32>
    tpu.vector_store %arg6[%c0_12, %c0_13, %c0_14], %25 {strides = array<i32>} : memref<1x64x4xf32, #tpu.memory_space<vmem>>, vector<1x64x4xf32>,
    return
  }
  func.func @transform_0(%arg0: i32, %arg1: i32) -> (i32, i32, i32, i32) {
    %c0_i32 = arith.constant 0 : i32
    %c0_i32_0 = arith.constant 0 : i32
    %c0_i32_1 = arith.constant 0 : i32
    return %arg0, %arg1, %c0_i32, %c0_i32_0 : i32, i32, i32, i32
  }
  func.func @transform_1(%arg0: i32, %arg1: i32) -> (i32, i32, i32) {
    %c0_i32 = arith.constant 0 : i32
    %c0_i32_0 = arith.constant 0 : i32
    %c0_i32_1 = arith.constant 0 : i32
    %c0_i32_2 = arith.constant 0 : i32
    return %c0_i32, %c0_i32_0, %c0_i32_1 : i32, i32, i32
  }
  func.func @transform_2(%arg0: i32, %arg1: i32) -> (i32, i32, i32) {
    %c0_i32 = arith.constant 0 : i32
    %c0_i32_0 = arith.constant 0 : i32
    %c0_i32_1 = arith.constant 0 : i32
    %c0_i32_2 = arith.constant 0 : i32
    return %c0_i32, %c0_i32_0, %c0_i32_1 : i32, i32, i32
  }
  func.func @transform_3(%arg0: i32, %arg1: i32) -> (i32, i32) {
    %c0_i32 = arith.constant 0 : i32
    %c0_i32_0 = arith.constant 0 : i32
    %c0_i32_1 = arith.constant 0 : i32
    return %c0_i32, %c0_i32_0 : i32, i32
  }
  func.func @transform_4(%arg0: i32, %arg1: i32) -> (i32, i32, i32) {
    %c0_i32 = arith.constant 0 : i32
    %c0_i32_0 = arith.constant 0 : i32
    return %arg0, %arg1, %c0_i32 : i32, i32, i32
  }
}

</mosaic_0001>

<llo_original>
// kernel: tpu_custom_call.1
$region0: #{tpu_custom_call.1}
  #allocation0 [shape = 'u32[]', space=smem, size = 0x4, offset = 0x4, fixed_abs, tag = 'smem constant byte address 0x4 - core index']
  #allocation1 [shape = 'u32[144,128]{1,0:T(1,128)}', space=vmem, size = 0x12000, scoped, tag = 'internal scratch']
  %s0 = inlined_call_operand.hbm [shape: f32[2,16,8,16], index: 0, kind: input, shape index: {}]
  %s1 = inlined_call_operand.vmem [shape: f32[1,1,16], index: 1, kind: input, shape index: {}]
  %s2 = inlined_call_operand.vmem [shape: f32[1,1,16], index: 2, kind: input, shape index: {}]
  %s3 = inlined_call_operand.vmem [shape: bf16[8,4], index: 3, kind: input, shape index: {}]
  %s4 = inlined_call_operand.vmem [shape: f32[2,64,4], index: 4, kind: output, shape index: {}]
  %s5 = sld [smem:[#allocation0]]
  $region53: #{tpu_custom_call.1} parent=0
    _
  %s7 = ssub.s32 1, %s5
  %s8 = scalar_select 0, %s7, %s5
  $region1: #{tpu_custom_call.1} parent=0
    #allocation2 [shape = 'u8[131072]{0}', space=vmem, size = 0x20000, scoped, tag = 'input window, operand 0']
    #allocation3 [shape = 's32[2]{0}', space=sflag, size = 0x8, scoped, tag = 'scoped memory for tpu_custom_call.1']
    %9 = vsyncpa [#allocation3], 0
    %s10 = scalar_lea.sflag [#allocation3], 1
    %11 = vsyncpa %s10, 0
    loop: start=0, step=1, limit=4
    $region2: #{tpu_custom_call.1} parent=1 // loop_pre_header
      _
    $region3: #{tpu_custom_call.1} parent=1 // loop_header
      %s13 = sphi 0, %s17
      %p14 = scmp.ge.s32.totalorder %s13, 4
      %s20 = sphi 0, %s32
      %s21 = sphi 0, %s28
      %s22 = sphi 0, %s20
      %s23 = sphi 0, %s21
      %s24 = sphi 0, %s22
      %s25 = sphi 0, %s23
      %s37 = sphi 0, %s39
      %s40 = sphi 0, %s37
      %s41 = sphi 0, %s40
      %s57 = sphi 0, %s41
      %s61 = sphi 0, %s61
      %s63 = sphi 0, %s61
      %s64 = sphi 0, %s63
      %s78 = sphi 0, %s64
      %s82 = sphi 0, %s82
      %s84 = sphi 0, %s82
      %s85 = sphi 0, %s84
      %s99 = sphi 0, %s85
      %s103 = sphi 0, %s103
      %s105 = sphi 0, %s103
      %s106 = sphi 0, %s105
      %s120 = sphi 0, %s106
      %s128 = sphi 0, %s130
      %s131 = sphi 0, %s128
      %s132 = sphi 0, %s131
      %s148 = sphi 0, %s132
    $region4: #{tpu_custom_call.1} parent=1 // loop_header_branch
      %16 = sbr.rel (%p14) target = $region8
    $region5: #{tpu_custom_call.1} parent=1 // loop_body
      %s18 = ssub.s32 %s13, 1
      %s19 = ssub.s32 %s13, 2
      %s26 = sadd.s32 1, %s21
      %p27 = scmp.ge.s32.totalorder %s26, 1
      %s28 = scalar_select %p27, 0, %s26
      %s29 = sadd.s32 1, %s20
      %s30 = scalar_select %p27, %s29, %s20
      %p31 = scmp.ge.s32.totalorder %s30, 2
      %s32 = scalar_select %p31, 0, %s30
      %s33 = ssub.s32 %s20, %s32
      %s34 = ssub.s32 %s21, %s28
      %s35 = sor.u32 %s33, %s34
      %p36 = scmp.eq.s32.totalorder %s35, 0
      %s38 = sadd.s32 %s37, 1
      %s39 = scalar_select %p36, %s37, %s38
      %p42 = pneg %p36
      %p43 = scmp.eq.s32.totalorder %s13, 1
      %p44 = por %p42, %p43
      %p45 = scmp.ne.s32.totalorder %s37, %s40
      %p46 = scmp.eq.s32.totalorder %s13, 0
      %p47 = por %p45, %p46
      %p48 = scmp.ne.s32.totalorder %s37, %s40
      %p49 = scmp.eq.s32.totalorder %s18, 1
      %p50 = por %p48, %p49
      %p51 = scmp.ne.s32.totalorder %s40, %s41
      %p52 = scmp.eq.s32.totalorder %s18, 0
      %p53 = por %p51, %p52
      %p54 = scmp.ne.s32.totalorder %s40, %s41
      %p55 = scmp.eq.s32.totalorder %s19, 1
      %p56 = por %p54, %p55
      %p58 = scmp.ne.s32.totalorder %s41, %s57
      %p59 = scmp.eq.s32.totalorder %s19, 0
      %p60 = por %p58, %p59
      %s62 = sadd.s32 %s61, 1
      %p65 = scmp.eq.s32.totalorder %s13, 1
      %p66 = scmp.ne.s32.totalorder %s61, %s63
      %p67 = scmp.eq.s32.totalorder %s13, 0
      %p68 = por %p66, %p67
      %p69 = scmp.ne.s32.totalorder %s61, %s63
      %p70 = scmp.eq.s32.totalorder %s18, 1
      %p71 = por %p69, %p70
      %p72 = scmp.ne.s32.totalorder %s63, %s64
      %p73 = scmp.eq.s32.totalorder %s18, 0
      %p74 = por %p72, %p73
      %p75 = scmp.ne.s32.totalorder %s63, %s64
      %p76 = scmp.eq.s32.totalorder %s19, 1
      %p77 = por %p75, %p76
      %p79 = scmp.ne.s32.totalorder %s64, %s78
      %p80 = scmp.eq.s32.totalorder %s19, 0
      %p81 = por %p79, %p80
      %s83 = sadd.s32 %s82, 1
      %p86 = scmp.eq.s32.totalorder %s13, 1
      %p87 = scmp.ne.s32.totalorder %s82, %s84
      %p88 = scmp.eq.s32.totalorder %s13, 0
      %p89 = por %p87, %p88
      %p90 = scmp.ne.s32.totalorder %s82, %s84
      %p91 = scmp.eq.s32.totalorder %s18, 1
      %p92 = por %p90, %p91
      %p93 = scmp.ne.s32.totalorder %s84, %s85
      %p94 = scmp.eq.s32.totalorder %s18, 0
      %p95 = por %p93, %p94
      %p96 = scmp.ne.s32.totalorder %s84, %s85
      %p97 = scmp.eq.s32.totalorder %s19, 1
      %p98 = por %p96, %p97
      %p100 = scmp.ne.s32.totalorder %s85, %s99
      %p101 = scmp.eq.s32.totalorder %s19, 0
      %p102 = por %p100, %p101
      %s104 = sadd.s32 %s103, 1
      %p107 = scmp.eq.s32.totalorder %s13, 1
      %p108 = scmp.ne.s32.totalorder %s103, %s105
      %p109 = scmp.eq.s32.totalorder %s13, 0
      %p110 = por %p108, %p109
      %p111 = scmp.ne.s32.totalorder %s103, %s105
      %p112 = scmp.eq.s32.totalorder %s18, 1
      %p113 = por %p111, %p112
      %p114 = scmp.ne.s32.totalorder %s105, %s106
      %p115 = scmp.eq.s32.totalorder %s18, 0
      %p116 = por %p114, %p115
      %p117 = scmp.ne.s32.totalorder %s105, %s106
      %p118 = scmp.eq.s32.totalorder %s19, 1
      %p119 = por %p117, %p118
      %p121 = scmp.ne.s32.totalorder %s106, %s120
      %p122 = scmp.eq.s32.totalorder %s19, 0
      %p123 = por %p121, %p122
      %s124 = ssub.s32 %s20, %s32
      %s125 = ssub.s32 %s21, %s28
      %s126 = sor.u32 %s124, %s125
      %p127 = scmp.eq.s32.totalorder %s126, 0
      %s129 = sadd.s32 %s128, 1
      %s130 = scalar_select %p127, %s128, %s129
      %p133 = pneg %p127
      %p134 = scmp.eq.s32.totalorder %s13, 1
      %p135 = por %p133, %p134
      %p136 = scmp.ne.s32.totalorder %s128, %s131
      %p137 = scmp.eq.s32.totalorder %s13, 0
      %p138 = por %p136, %p137
      %p139 = scmp.ne.s32.totalorder %s128, %s131
      %p140 = scmp.eq.s32.totalorder %s18, 1
      %p141 = por %p139, %p140
      %p142 = scmp.ne.s32.totalorder %s131, %s132
      %p143 = scmp.eq.s32.totalorder %s18, 0
      %p144 = por %p142, %p143
      %p145 = scmp.ne.s32.totalorder %s131, %s132
      %p146 = scmp.eq.s32.totalorder %s19, 1
      %p147 = por %p145, %p146
      %p149 = scmp.ne.s32.totalorder %s132, %s148
      %p150 = scmp.eq.s32.totalorder %s19, 0
      %p151 = por %p149, %p150
      %p152 = scmp.le.s32.totalorder 1, %s13
      %p153 = scmp.lt.s32.totalorder %s13, 3
      %p154 = pnand %p152, %p153
      %p155 = pneg %p154
      // Predicated region
      $region9: #{tpu_custom_call.1} parent=5 // pred_check
        _
      $region10: #{tpu_custom_call.1} parent=5 // pred_check_branch
        %157 = sbr.rel (%p154) target = $region12
      $region11: #{tpu_custom_call.1} parent=5 // pred_region
        %s158 = ssub.s32 %s13, 1
        // Predicated region
        $region13: #{tpu_custom_call.1} parent=11 // pred_check
          %p159 = pneg %p74
        $region14: #{tpu_custom_call.1} parent=11 // pred_check_branch
          %161 = sbr.rel (%p159) target = $region16
        $region15: #{tpu_custom_call.1} parent=11 // pred_region
          _
        $region16: #{tpu_custom_call.1} parent=11 // pred_fallthru
          _
        // Predicated region
        $region17: #{tpu_custom_call.1} parent=11 // pred_check
          %p162 = pneg %p95
        $region18: #{tpu_custom_call.1} parent=11 // pred_check_branch
          %164 = sbr.rel (%p162) target = $region20
        $region19: #{tpu_custom_call.1} parent=11 // pred_region
          _
        $region20: #{tpu_custom_call.1} parent=11 // pred_fallthru
          _
        // Predicated region
        $region21: #{tpu_custom_call.1} parent=11 // pred_check
          %p165 = pneg %p116
        $region22: #{tpu_custom_call.1} parent=11 // pred_check_branch
          %167 = sbr.rel (%p165) target = $region24
        $region23: #{tpu_custom_call.1} parent=11 // pred_region
          _
        $region24: #{tpu_custom_call.1} parent=11 // pred_fallthru
          _
      $region12: #{tpu_custom_call.1} parent=5 // pred_fallthru
        _
      %p168 = scmp.lt.s32.totalorder %s13, 2
      // Predicated region
      $region25: #{tpu_custom_call.1} parent=5 // pred_check
        %p169 = pneg %p168
      $region26: #{tpu_custom_call.1} parent=5 // pred_check_branch
        %171 = sbr.rel (%p169) target = $region28
      $region27: #{tpu_custom_call.1} parent=5 // pred_region
        // Predicated region
        $region29: #{tpu_custom_call.1} parent=27 // pred_check
          %p172 = pneg %p47
        $region30: #{tpu_custom_call.1} parent=27 // pred_check_branch
          %174 = sbr.rel (%p172) target = $region32
        $region31: #{tpu_custom_call.1} parent=27 // pred_region
          %s175 = sand.u32 %s37, 1
          %s176 = scalar_lea.sflag [#allocation3], %s175
          %s177 = sand.u32 %s37, 1
          %s178 = smul.addr %s177, 128
          %s179 = scalar_lea.vmem [#allocation2], %s178
          %s180 = smul.u32 16, %s21
          %s182 = ssub.s32 2048, 2048
          %183 = vsyncadd %s176, %s182
          %s184 = smul.addr %s20, 16
          %s185 = sadd.s32 %s180, %s184
          %s186 = smul.addr %s185, 128
          %s187 = scalar_lea.hbm %s0, %s186
          %s188 = sshll.u32 %s179, 4
          %s189 = int_to_ptr.vmem [resolvable:$true] %s188
          %194 = dma.hbm_to_vmem [thread:$0]  %s187, 2048, %s189, %s176, 128, 128, 8
        $region32: #{tpu_custom_call.1} parent=27 // pred_fallthru
          _
      $region28: #{tpu_custom_call.1} parent=5 // pred_fallthru
        _
      %p195 = scmp.le.s32.totalorder 1, %s13
      %p196 = scmp.lt.s32.totalorder %s13, 3
      %p197 = pnand %p195, %p196
      %p198 = pneg %p197
      // Predicated region
      $region33: #{tpu_custom_call.1} parent=5 // pred_check
        _
      $region34: #{tpu_custom_call.1} parent=5 // pred_check_branch
        %200 = sbr.rel (%p197) target = $region36
      $region35: #{tpu_custom_call.1} parent=5 // pred_region
        %s201 = ssub.s32 %s13, 1
        %s202 = sand.u32 %s40, 1
        %s203 = scalar_lea.sflag [#allocation3], %s202
        %s204 = sand.u32 %s40, 1
        %s205 = smul.addr %s204, 128
        %s206 = scalar_lea.vmem [#allocation2], %s205
        // Predicated region
        $region37: #{tpu_custom_call.1} parent=35 // pred_check
          %p207 = pneg %p53
        $region38: #{tpu_custom_call.1} parent=35 // pred_check_branch
          %209 = sbr.rel (%p207) target = $region40
        $region39: #{tpu_custom_call.1} parent=35 // pred_region
          %210 = dma.done %s203, 2048
        $region40: #{tpu_custom_call.1} parent=35 // pred_fallthru
          _
        %s211 = sand.u32 %s40, 1
        %s212 = scalar_lea.sflag [#allocation3], %s211
        %s213 = sand.u32 %s40, 1
        %s214 = smul.addr %s213, 128
        %s215 = scalar_lea.vmem [#allocation2], %s214
        %p216 = pneg %p53
        %p217 = pneg %p50
        %p218 = pneg %p74
        %p219 = pneg %p71
        %p220 = pneg %p95
        %p221 = pneg %p92
        %p222 = pneg %p116
        %p223 = pneg %p113
        %p224 = pneg %p144
        %p225 = pneg %p141
        %s226 = smul.u32 8, %s23
        %p227 = scmp.lt.s32.totalorder %s22, 1
        %s228 = scalar_select %p227, %s22, 1
        %p229 = scmp.lt.s32.totalorder %s226, 7
        %s230 = scalar_select %p229, %s226, 7
        %s231 = smul.addr %s228, 8
        %s232 = sadd.s32 %s230, %s231
        %s233 = smul.addr %s232, 8
        %s234 = scalar_lea.vmem %s4, %s233
        %s235 = smul.u32 16, %s23
        %s236 = smul.u32 8, %s23
        %p237 = scmp.lt.s32.totalorder %s22, 1
        %s238 = scalar_select %p237, %s22, 1
        %p239 = scmp.lt.s32.totalorder %s236, 7
        %s240 = scalar_select %p239, %s236, 7
        %s241 = smul.addr %s238, 8
        %s242 = sadd.s32 %s240, %s241
        %s243 = smul.addr %s242, 8
        %s244 = scalar_lea.vmem %s4, %s243
        %s245 = smul.u32 8, %s23
        %v247 = vld [vmem:[%s206] sm:$0xff]
        %v248 = vld [vmem:[%s206 + $0x8] sm:$0xff]
        %v249 = vld [vmem:[%s206 + $0x10] sm:$0xff]
        %v250 = vld [vmem:[%s206 + $0x18] sm:$0xff]
        %v251 = vld [vmem:[%s206 + $0x20] sm:$0xff]
        %v252 = vld [vmem:[%s206 + $0x28] sm:$0xff]
        %v253 = vld [vmem:[%s206 + $0x30] sm:$0xff]
        %v254 = vld [vmem:[%s206 + $0x38] sm:$0xff]
        %v255 = vld [vmem:[%s206 + $0x40] sm:$0xff]
        %v256 = vld [vmem:[%s206 + $0x48] sm:$0xff]
        %v257 = vld [vmem:[%s206 + $0x50] sm:$0xff]
        %v258 = vld [vmem:[%s206 + $0x58] sm:$0xff]
        %v259 = vld [vmem:[%s206 + $0x60] sm:$0xff]
        %v260 = vld [vmem:[%s206 + $0x68] sm:$0xff]
        %v261 = vld [vmem:[%s206 + $0x70] sm:$0xff]
        %v262 = vld [vmem:[%s206 + $0x78] sm:$0xff]
        %v263 = vld [vmem:[%s1] sm:$0x1]
        %v265 = vlaneseq
        %v266 = vshrl.u32 %v265, 7
        %v267 = vsub.s32 0, %v266
        %v268 = vrot.slane %v263, %v267
        %v270 = vmul.f32 %v247, %v268
        %v271 = vmul.f32 %v248, %v268
        %v272 = vmul.f32 %v249, %v268
        %v273 = vmul.f32 %v250, %v268
        %v274 = vmul.f32 %v251, %v268
        %v275 = vmul.f32 %v252, %v268
        %v276 = vmul.f32 %v253, %v268
        %v277 = vmul.f32 %v254, %v268
        %v278 = vmul.f32 %v255, %v268
        %v279 = vmul.f32 %v256, %v268
        %v280 = vmul.f32 %v257, %v268
        %v281 = vmul.f32 %v258, %v268
        %v282 = vmul.f32 %v259, %v268
        %v283 = vmul.f32 %v260, %v268
        %v284 = vmul.f32 %v261, %v268
        %v285 = vmul.f32 %v262, %v268
        %v286 = vld [vmem:[%s2] sm:$0x1]
        %v288 = vlaneseq
        %v289 = vshrl.u32 %v288, 7
        %v290 = vsub.s32 0, %v289
        %v291 = vrot.slane %v286, %v290
        %v293 = vadd.f32 %v270, %v291
        %v294 = vadd.f32 %v271, %v291
        %v295 = vadd.f32 %v272, %v291
        %v296 = vadd.f32 %v273, %v291
        %v297 = vadd.f32 %v274, %v291
        %v298 = vadd.f32 %v275, %v291
        %v299 = vadd.f32 %v276, %v291
        %v300 = vadd.f32 %v277, %v291
        %v301 = vadd.f32 %v278, %v291
        %v302 = vadd.f32 %v279, %v291
        %v303 = vadd.f32 %v280, %v291
        %v304 = vadd.f32 %v281, %v291
        %v305 = vadd.f32 %v282, %v291
        %v306 = vadd.f32 %v283, %v291
        %v307 = vadd.f32 %v284, %v291
        %v308 = vadd.f32 %v285, %v291
        %v309 = vmax.f32 %v293, 0.0
        %v310 = vmax.f32 %v294, 0.0
        %v311 = vmax.f32 %v295, 0.0
        %v312 = vmax.f32 %v296, 0.0
        %v313 = vmax.f32 %v297, 0.0
        %v314 = vmax.f32 %v298, 0.0
        %v315 = vmax.f32 %v299, 0.0
        %v316 = vmax.f32 %v300, 0.0
        %v317 = vmax.f32 %v301, 0.0
        %v318 = vmax.f32 %v302, 0.0
        %v319 = vmax.f32 %v303, 0.0
        %v320 = vmax.f32 %v304, 0.0
        %v321 = vmax.f32 %v305, 0.0
        %v322 = vmax.f32 %v306, 0.0
        %v323 = vmax.f32 %v307, 0.0
        %v324 = vmax.f32 %v308, 0.0
        %341 = vrot.lane.b32.xlu0 %v309, 120
        %v342 = vpop.permute.xlu0 %341
        %343 = vrot.lane.b32.xlu0 %v310, 120
        %v344 = vpop.permute.xlu0 %343
        %345 = vrot.lane.b32.xlu0 %v311, 120
        %v346 = vpop.permute.xlu0 %345
        %347 = vrot.lane.b32.xlu0 %v312, 120
        %v348 = vpop.permute.xlu0 %347
        %349 = vrot.lane.b32.xlu0 %v313, 120
        %v350 = vpop.permute.xlu0 %349
        %351 = vrot.lane.b32.xlu0 %v314, 120
        %v352 = vpop.permute.xlu0 %351
        %353 = vrot.lane.b32.xlu0 %v315, 120
        %v354 = vpop.permute.xlu0 %353
        %355 = vrot.lane.b32.xlu0 %v316, 120
        %v356 = vpop.permute.xlu0 %355
        %357 = vrot.lane.b32.xlu0 %v317, 120
        %v358 = vpop.permute.xlu0 %357
        %359 = vrot.lane.b32.xlu0 %v318, 120
        %v360 = vpop.permute.xlu0 %359
        %361 = vrot.lane.b32.xlu0 %v319, 120
        %v362 = vpop.permute.xlu0 %361
        %363 = vrot.lane.b32.xlu0 %v320, 120
        %v364 = vpop.permute.xlu0 %363
        %365 = vrot.lane.b32.xlu0 %v321, 120
        %v366 = vpop.permute.xlu0 %365
        %367 = vrot.lane.b32.xlu0 %v322, 120
        %v368 = vpop.permute.xlu0 %367
        %369 = vrot.lane.b32.xlu0 %v323, 120
        %v370 = vpop.permute.xlu0 %369
        %371 = vrot.lane.b32.xlu0 %v324, 120
        %v372 = vpop.permute.xlu0 %371
        %v389 = vadd.f32 %v309, %v342
        %v390 = vadd.f32 %v310, %v344
        %v391 = vadd.f32 %v311, %v346
        %v392 = vadd.f32 %v312, %v348
        %v393 = vadd.f32 %v313, %v350
        %v394 = vadd.f32 %v314, %v352
        %v395 = vadd.f32 %v315, %v354
        %v396 = vadd.f32 %v316, %v356
        %v397 = vadd.f32 %v317, %v358
        %v398 = vadd.f32 %v318, %v360
        %v399 = vadd.f32 %v319, %v362
        %v400 = vadd.f32 %v320, %v364
        %v401 = vadd.f32 %v321, %v366
        %v402 = vadd.f32 %v322, %v368
        %v403 = vadd.f32 %v323, %v370
        %v404 = vadd.f32 %v324, %v372
        %v405 = vadd.f32 %v389, %v390
        %v406 = vadd.f32 %v391, %v392
        %v407 = vadd.f32 %v393, %v394
        %v408 = vadd.f32 %v395, %v396
        %v409 = vadd.f32 %v397, %v398
        %v410 = vadd.f32 %v399, %v400
        %v411 = vadd.f32 %v401, %v402
        %v412 = vadd.f32 %v403, %v404
        %v413 = vpack.c.bf16 %v406, %v405
        %v414 = vpack.c.bf16 %v408, %v407
        %v415 = vpack.c.bf16 %v410, %v409
        %v416 = vpack.c.bf16 %v412, %v411
        %v417 = vld [vmem:[%s3] sm:$0xf]
        %vm418 = vcmask 64512
        %v420 = vsel %vm418, %v413, 0
        %v423 = vsel %vm418, %v414, 0
        %v426 = vsel %vm418, %v415, 0
        %v429 = vsel %vm418, %v416, 0
        %vm431 = vcmask 1043456
        %v433 = vsel %vm431, %v417, 0
        %435 = vmatprep.subr.bf16.mxu0 0
        %436 = vmatpush1.bf16.msra.mxu0 %v433
        %437 = vmatprep.subr.bf16.mxu0 0
        %438 = vmatpush1.bf16.msra.mxu0 0
        %439 = vmatprep.subr.bf16.mxu0 0
        %440 = vmatpush1.bf16.msra.mxu0 0
        %441 = vmatprep.subr.bf16.mxu0 0
        %442 = vmatpush1.bf16.msra.mxu0 0
        %443 = vmatprep.subr.bf16.mxu0 0
        %444 = vmatpush1.bf16.msra.mxu0 0
        %445 = vmatprep.subr.bf16.mxu0 0
        %446 = vmatpush1.bf16.msra.mxu0 0
        %447 = vmatprep.subr.bf16.mxu0 0
        %448 = vmatpush1.bf16.msra.mxu0 0
        %449 = vmatprep.subr.bf16.mxu0 0
        %450 = vmatpush1.bf16.msra.mxu0 0
        %451 = vmatprep.subr.bf16.mxu0 0
        %452 = vmatpush1.bf16.msra.mxu0 0
        %453 = vmatprep.subr.bf16.mxu0 0
        %454 = vmatpush1.bf16.msra.mxu0 0
        %455 = vmatprep.subr.bf16.mxu0 0
        %456 = vmatpush1.bf16.msra.mxu0 0
        %457 = vmatprep.subr.bf16.mxu0 0
        %458 = vmatpush1.bf16.msra.mxu0 0
        %459 = vmatprep.subr.bf16.mxu0 0
        %460 = vmatpush1.bf16.msra.mxu0 0
        %461 = vmatprep.subr.bf16.mxu0 0
        %462 = vmatpush1.bf16.msra.mxu0 0
        %463 = vmatprep.subr.bf16.mxu0 0
        %464 = vmatpush1.bf16.msra.mxu0 0
        %465 = vmatprep.subr.bf16.mxu0 0
        %466 = vmatpush1.bf16.msra.mxu0 0
        %467 = vmatprep.mubr.bf16.mxu0 0
        %468 = vmatmul.mubr.bf16.gmra.mrb[0].mxu0 %v420
        %v469 = vpop.f32.mrb[0].mxu0
        %v470 = vadd.f32 0.0, %v469
        %v471 = vpop.f32.mrb[0].mxu0
        %v472 = vpop.f32.mrb[0].mxu0
        %v473 = vadd.f32 0.0, %v472
        %v474 = vpop.f32.mrb[0].mxu0
        %475 = vmatprep.mubr.bf16.mxu0 0
        %476 = vmatmul.mubr.bf16.gmra.mrb[0].mxu0 %v423
        %v477 = vpop.f32.mrb[0].mxu0
        %v478 = vadd.f32 0.0, %v477
        %v479 = vpop.f32.mrb[0].mxu0
        %v480 = vpop.f32.mrb[0].mxu0
        %v481 = vadd.f32 0.0, %v480
        %v482 = vpop.f32.mrb[0].mxu0
        %483 = vmatprep.mubr.bf16.mxu0 0
        %484 = vmatmul.mubr.bf16.gmra.mrb[0].mxu0 %v426
        %v485 = vpop.f32.mrb[0].mxu0
        %v486 = vadd.f32 0.0, %v485
        %v487 = vpop.f32.mrb[0].mxu0
        %v488 = vpop.f32.mrb[0].mxu0
        %v489 = vadd.f32 0.0, %v488
        %v490 = vpop.f32.mrb[0].mxu0
        %491 = vmatprep.mubr.bf16.mxu0 0
        %492 = vmatmul.mubr.bf16.gmra.mrb[0].mxu0 %v429
        %v493 = vpop.f32.mrb[0].mxu0
        %v494 = vadd.f32 0.0, %v493
        %v495 = vpop.f32.mrb[0].mxu0
        %v496 = vpop.f32.mrb[0].mxu0
        %v497 = vadd.f32 0.0, %v496
        %v498 = vpop.f32.mrb[0].mxu0
        %499 = vdwg.mxu0
        %vm500 = vcmask 31744
        %501 = vst.msk [vmem:[%s244] sm:$0xff] %vm500, %v470
        %502 = vst.msk [vmem:[%s244 + $0x8] sm:$0xff] %vm500, %v473
        %503 = vst.msk [vmem:[%s244 + $0x10] sm:$0xff] %vm500, %v478
        %504 = vst.msk [vmem:[%s244 + $0x18] sm:$0xff] %vm500, %v481
        %505 = vst.msk [vmem:[%s244 + $0x20] sm:$0xff] %vm500, %v486
        %506 = vst.msk [vmem:[%s244 + $0x28] sm:$0xff] %vm500, %v489
        %507 = vst.msk [vmem:[%s244 + $0x30] sm:$0xff] %vm500, %v494
        %508 = vst.msk [vmem:[%s244 + $0x38] sm:$0xff] %vm500, %v497
        %s509 = smul.u32 8, %s23
        %p510 = scmp.lt.s32.totalorder %s22, 1
        %s511 = scalar_select %p510, %s22, 1
        %p512 = scmp.lt.s32.totalorder %s509, 7
        %s513 = scalar_select %p512, %s509, 7
        %s514 = smul.addr %s511, 8
        %s515 = sadd.s32 %s513, %s514
        %s516 = smul.addr %s515, 8
        %s517 = scalar_lea.vmem %s4, %s516
        // Predicated region
        $region41: #{tpu_custom_call.1} parent=35 // pred_check
          %p518 = pneg %p141
        $region42: #{tpu_custom_call.1} parent=35 // pred_check_branch
          %520 = sbr.rel (%p518) target = $region44
        $region43: #{tpu_custom_call.1} parent=35 // pred_region
          %s521 = smul.u32 8, %s23
        $region44: #{tpu_custom_call.1} parent=35 // pred_fallthru
          _
      $region36: #{tpu_custom_call.1} parent=5 // pred_fallthru
        _
      %p522 = scmp.le.s32.totalorder 2, %s13
      // Predicated region
      $region45: #{tpu_custom_call.1} parent=5 // pred_check
        %p523 = pneg %p522
      $region46: #{tpu_custom_call.1} parent=5 // pred_check_branch
        %525 = sbr.rel (%p523) target = $region48
      $region47: #{tpu_custom_call.1} parent=5 // pred_region
        %s526 = ssub.s32 %s13, 2
        // Predicated region
        $region49: #{tpu_custom_call.1} parent=47 // pred_check
          %p527 = pneg %p147
        $region50: #{tpu_custom_call.1} parent=47 // pred_check_branch
          %529 = sbr.rel (%p527) target = $region52
        $region51: #{tpu_custom_call.1} parent=47 // pred_region
          %s530 = smul.u32 8, %s25
          %p531 = scmp.lt.s32.totalorder %s24, 1
          %s532 = scalar_select %p531, %s24, 1
          %p533 = scmp.lt.s32.totalorder %s530, 7
          %s534 = scalar_select %p533, %s530, 7
          %s535 = smul.addr %s532, 8
          %s536 = sadd.s32 %s534, %s535
          %s537 = smul.addr %s536, 8
          %s538 = scalar_lea.vmem %s4, %s537
        $region52: #{tpu_custom_call.1} parent=47 // pred_fallthru
          _
      $region48: #{tpu_custom_call.1} parent=5 // pred_fallthru
        _
    $region6: #{tpu_custom_call.1} parent=1 // loop_footer
      %s17 = sadd.s32 1, %s13
    $region7: #{tpu_custom_call.1} parent=1 // loop_footer_branch
      %12 = sbr.rel target = $region3
    $region8: #{tpu_custom_call.1} parent=1 // loop_exit
      _
    %539 = vsyncpa [#allocation3], 1
    %s540 = scalar_lea.sflag [#allocation3], 1
    %541 = vsyncpa %s540, 1

</llo_original>
